<compile_context>
chip_gen: v7x
topology: tpu7x:2x2x1
jax: 0.10.0
libtpu: 0.0.40
codegen_flags: <defaults>
</compile_context>

<pallas_src>
import jax
import jax.numpy as jnp
from jax.experimental import pallas as pl
from jax.experimental.pallas import tpu as pltpu


def _round_up(x, m):
    return ((x + m - 1) // m) * m


def _cdiv(a, b):
    return -(-a // b)


# ----------------------------------------------------------------------------
# Generation-aware tiling defaults
# ----------------------------------------------------------------------------
def _chip_tiling_defaults():
    """Returns (vmem_budget_bytes, tm_target) based on the actual chip."""
    try:
        vmem_cap = int(pltpu.get_tpu_info().vmem_capacity_bytes)
    except Exception:
        vmem_cap = 64 * 1024 * 1024           # conservative fallback (v7x-sized)
    # Leave headroom for Mosaic internal scratch / double buffering.
    vmem_budget = int(vmem_cap * 0.75)
    # v5e/v6e have 128 MiB VMEM -> big hidden tile; v7x has 64 MiB -> 512.
    tm_target = 1024 if vmem_cap >= 96 * 1024 * 1024 else 512
    return vmem_budget, tm_target


def _pick_v_tile(v_padded):
    """Largest 128-multiple tile (<=512) that divides the padded vocab."""
    for vt in (512, 256, 128):
        if v_padded % vt == 0:
            return vt
    return 128


# ----------------------------------------------------------------------------
# One-time weight preparation (hoisted out of the per-call path)
# ----------------------------------------------------------------------------
def prepare_head_weights(head_weights_f32):
    """Cast [nH, H, V] head weights to bf16 and pad V to a lane multiple once,
    at init time.  Returns (prepared_weights, original_vocab_size)."""
    num_heads, H, V = head_weights_f32.shape
    V_pad = _round_up(V, 128)
    w = head_weights_f32.astype(jnp.bfloat16)
    if V_pad != V:
        w = jnp.pad(w, ((0, 0), (0, 0), (0, V_pad - V)))
    return w, V


# ----------------------------------------------------------------------------
# Pallas kernel: multi-head LM projection
# ----------------------------------------------------------------------------
def _mh_lm_head_kernel(h_ref, w_ref, o_ref):
    # h_ref: [tm, H]  bf16 (hidden tile, resident across the head/vocab sweep)
    # w_ref: [H, vt]  bf16 (one head, one vocab tile; head axis squeezed)
    # o_ref: [tm, vt] out_dtype (f32 MXU accumulation)
    o_ref[...] = jnp.dot(
        h_ref[...], w_ref[...], preferred_element_type=jnp.float32
    ).astype(o_ref.dtype)


def multi_head_lm_projection(hidden_flat, head_weights_prepped, vocab_size, *,
                             tm=None, out_dtype=jnp.float32):
    """hidden_flat: [M, H] (any float dtype); head_weights_prepped: [nH, H, V_pad]
       bf16 from prepare_head_weights.  Returns logits [nH, M, vocab_size]."""
    M, H = hidden_flat.shape
    num_heads, H2, V_pad = head_weights_prepped.shape
    assert H == H2

    # bf16 activations -> MXU bf16 peak; accumulation stays f32 in the kernel.
    h_bf = hidden_flat.astype(jnp.bfloat16)

    vt = _pick_v_tile(V_pad)
    vmem_budget, tm_target = _chip_tiling_defaults()
    if tm is None:
        tm = tm_target

    # Clamp for small M (16-row granularity: bf16 packs 16 sublanes per vreg),
    # then cdiv-balance so a ragged M does not pad up to a whole extra tile.
    tm = max(16, min(tm, _round_up(M, 16)))
    n_m = _cdiv(M, tm)
    tm = _round_up(_cdiv(M, n_m), 16)

    # Shrink tm until the double-buffered working set fits the VMEM budget.
    # TODO(synk): for H >= ~8K add an inner K-tiling ("arbitrary") axis with a
    #             VMEM f32 accumulator instead of shrinking tm.
    out_bytes = jnp.dtype(out_dtype).itemsize
    def _working_set(tm_):
        return 2 * (tm_ * H * 2 + H * vt * 2 + tm_ * vt * out_bytes)
    while tm > 16 and _working_set(tm) > vmem_budget:
        tm = max(16, _round_up(tm // 2, 16))

    M_pad = _round_up(M, tm)
    if M_pad != M:
        h_bf = jnp.pad(h_bf, ((0, M_pad - M), (0, 0)))

    m_tiles = M_pad // tm
    v_tiles = V_pad // vt

    # Adaptive grid ordering: vocab always innermost (hidden tile resident,
    # only the weight tile streams).  Leading parallel axis carries the most
    # work: m-tiles for prefill, heads for decode-sized M (single m-tile) so
    # the v7x megacore still has something to shard.
    if m_tiles > 1:
        grid = (m_tiles, num_heads, v_tiles)
        h_map = lambda m, hd, v: (m, 0)
        w_map = lambda m, hd, v: (hd, 0, v)
        o_map = lambda m, hd, v: (hd, m, v)
    else:
        grid = (num_heads, m_tiles, v_tiles)
        h_map = lambda hd, m, v: (m, 0)
        w_map = lambda hd, m, v: (hd, 0, v)
        o_map = lambda hd, m, v: (hd, m, v)

    logits = pl.pallas_call(
        _mh_lm_head_kernel,
        out_shape=jax.ShapeDtypeStruct((num_heads, M_pad, V_pad), out_dtype),
        grid_spec=pltpu.PrefetchScalarGridSpec(
            num_scalar_prefetch=0,
            grid=grid,
            in_specs=[
                # hidden tile: block index depends only on m -> fetched once
                pl.BlockSpec((tm, H), h_map),
                # per-head, per-vocab-tile weight block (head axis squeezed)
                pl.BlockSpec((None, H, vt), w_map),
            ],
            out_specs=pl.BlockSpec((None, tm, vt), o_map),
        ),
        compiler_params=pltpu.CompilerParams(
            dimension_semantics=("parallel", "parallel", "parallel"),
            vmem_limit_bytes=vmem_budget,
        ),
    )(h_bf, head_weights_prepped)

    if M_pad != M or V_pad != vocab_size:
        logits = logits[:, :M, :vocab_size]
    return logits


# ----------------------------------------------------------------------------
# Synthetic "base model" (plain-JAX glue) producing hidden_states[-1]
# ----------------------------------------------------------------------------
def _layernorm(x, gamma, beta, eps=1e-5):
    mu = jnp.mean(x, axis=-1, keepdims=True)
    var = jnp.mean((x - mu) ** 2, axis=-1, keepdims=True)
    return (x - mu) * jax.lax.rsqrt(var + eps) * gamma + beta


def synthetic_base_model(params, input_ids, attention_mask=None):
    """Tiny causal decoder; returns last hidden states [B, S, H]."""
    B, S = input_ids.shape
    x = params["embed"][input_ids] + params["pos_embed"][:S][None, :, :]  # [B,S,H]

    # --- one causal self-attention block -------------------------------------
    h = _layernorm(x, params["ln1_g"], params["ln1_b"])
    q = h @ params["wq"]
    k = h @ params["wk"]
    v = h @ params["wv"]
    scale = 1.0 / jnp.sqrt(jnp.float32(q.shape[-1]))
    scores = jnp.einsum("bqd,bkd->bqk", q, k) * scale           # [B,S,S]
    causal = jnp.tril(jnp.ones((S, S), dtype=bool))[None, :, :]
    mask = causal
    if attention_mask is not None:
        mask = mask & (attention_mask[:, None, :] > 0)
    scores = jnp.where(mask, scores, -1e30)
    probs = jax.nn.softmax(scores, axis=-1)
    attn = jnp.einsum("bqk,bkd->bqd", probs, v) @ params["wo"]
    x = x + attn

    # --- MLP ------------------------------------------------------------------
    h = _layernorm(x, params["ln2_g"], params["ln2_b"])
    x = x + jax.nn.gelu(h @ params["w_up"]) @ params["w_down"]

    # --- final layernorm (last hidden state) ---------------------------------
    return _layernorm(x, params["lnf_g"], params["lnf_b"])


# ----------------------------------------------------------------------------
# MultiHeadCausalLM forward
# ----------------------------------------------------------------------------
def multi_head_causal_lm_forward(params, input_ids, attention_mask=None,
                                 out_dtype=jnp.float32):
    B, S = input_ids.shape
    hidden = synthetic_base_model(params, input_ids, attention_mask)   # [B,S,H]
    H = hidden.shape[-1]
    hidden_flat = hidden.reshape(B * S, H)

    logits_flat = multi_head_lm_projection(
        hidden_flat,
        params["head_weights_bf16"],        # pre-cast/pre-padded at init time
        params["vocab_size"],
        out_dtype=out_dtype,
    )                                                                  # [nH, B*S, V]
    num_heads = params["head_weights_bf16"].shape[0]
    V = params["vocab_size"]
    return {"logits": logits_flat.reshape(num_heads, B, S, V)}


# ----------------------------------------------------------------------------
# Deterministic parameter construction
# ----------------------------------------------------------------------------
def make_params(key, *, vocab_size, hidden_size, max_seq, num_heads):
    keys = jax.random.split(key, 12)
    H, V = hidden_size, vocab_size
    s = 0.02

    # The first head mirrors base_model.lm_head; the remaining heads copy its
    # weight (matching `new_head.weight.data.copy_(self.heads[0].weight.data)`).
    lm_head_w = jax.random.normal(keys[0], (V, H), jnp.float32) * s    # PyTorch [V,H]
    head_weights = jnp.broadcast_to(lm_head_w.T[None], (num_heads, H, V)).copy()

    # Hoisted one-time cast/pad of the head weights (perf review item 1).
    head_weights_bf16, v_orig = prepare_head_weights(head_weights)

    return {
        "embed":     jax.random.normal(keys[1], (V, H), jnp.float32) * s,
        "pos_embed": jax.random.normal(keys[2], (max_seq, H), jnp.float32) * s,
        "wq":  jax.random.normal(keys[3], (H, H), jnp.float32) * s,
        "wk":  jax.random.normal(keys[4], (H, H), jnp.float32) * s,
        "wv":  jax.random.normal(keys[5], (H, H), jnp.float32) * s,
        "wo":  jax.random.normal(keys[6], (H, H), jnp.float32) * s,
        "w_up":   jax.random.normal(keys[7], (H, 4 * H), jnp.float32) * s,
        "w_down": jax.random.normal(keys[8], (4 * H, H), jnp.float32) * s,
        "ln1_g": jnp.ones((H,), jnp.float32), "ln1_b": jnp.zeros((H,), jnp.float32),
        "ln2_g": jnp.ones((H,), jnp.float32), "ln2_b": jnp.zeros((H,), jnp.float32),
        "lnf_g": jnp.ones((H,), jnp.float32), "lnf_b": jnp.zeros((H,), jnp.float32),
        "head_weights":      head_weights,        # f32 reference copy [nH, H, V]
        "head_weights_bf16": head_weights_bf16,   # bf16, V padded to lane mult
        "vocab_size":        v_orig,
    }


# ----------------------------------------------------------------------------
if __name__ == "__main__":
    B, S, H, V, NUM_HEADS = 2, 8, 32, 256, 3

    key = jax.random.PRNGKey(0)
    k_params, k_ids = jax.random.split(key)
    params = make_params(
        k_params, vocab_size=V, hidden_size=H, max_seq=S, num_heads=NUM_HEADS
    )

    input_ids = jax.random.randint(k_ids, (B, S), 0, V, dtype=jnp.int32)
    attention_mask = jnp.ones((B, S), dtype=jnp.int32)

    out = multi_head_causal_lm_forward(params, input_ids, attention_mask)
    logits = jax.block_until_ready(out["logits"])          # [NUM_HEADS, B, S, V]

    assert logits.shape == (NUM_HEADS, B, S, V), logits.shape

    # Cross-check the Pallas projection against plain JAX.
    hidden = synthetic_base_model(params, input_ids, attention_mask)
    # Exact-semantics reference using the same bf16-rounded operands the
    # kernel sees (MXU accumulates in f32) -> tight tolerance.
    h_bf = hidden.astype(jnp.bfloat16).astype(jnp.float32)
    w_bf = params["head_weights"].astype(jnp.bfloat16).astype(jnp.float32)
    ref_bf = jnp.einsum("bsh,nhv->nbsv", h_bf, w_bf)
    assert jnp.allclose(logits, ref_bf, atol=1e-4, rtol=1e-4)

    # Loose check against the full-f32 reference (bf16 input rounding only).
    ref_f32 = jnp.einsum("bsh,nhv->nbsv", hidden, params["head_weights"])
    assert jnp.allclose(logits, ref_f32, atol=5e-3, rtol=5e-2)

    print("KERNEL_OK")
</pallas_src>

<mosaic_0001>
module attributes {stable_mosaic.version = 11 : i64} {
  func.func @_mh_lm_head_kernel(%arg0: i32, %arg1: i32, %arg2: i32, %arg3: memref<16x32xbf16, #tpu.memory_space<vmem>>, %arg4: memref<1x32x256xbf16, #tpu.memory_space<vmem>>, %arg5: memref<1x16x256xf32, #tpu.memory_space<vmem>>) attributes {dimension_semantics = [#tpu.dimension_semantics<parallel>, #tpu.dimension_semantics<parallel>, #tpu.dimension_semantics<parallel>], iteration_bounds = array<i64: 3, 1, 1>, scalar_prefetch = 0 : i64, scratch_operands = 0 : i64, tpu.core_type = #tpu.core_type<tc>, window_params = [{transform_indices = @transform_0, window_bounds = array<i64: 16, 32>}, {transform_indices = @transform_1, window_bounds = array<i64: 1, 32, 256>}, {transform_indices = @transform_2, window_bounds = array<i64: 1, 16, 256>}]} {
    %c0 = arith.constant 0 : index
    %c0_0 = arith.constant 0 : index
    %0 = vector.load %arg3[%c0, %c0_0] : memref<16x32xbf16, #tpu.memory_space<vmem>>, vector<16x32xbf16>
    %c0_1 = arith.constant 0 : index
    %c0_2 = arith.constant 0 : index
    %c0_3 = arith.constant 0 : index
    %1 = vector.load %arg4[%c0_1, %c0_2, %c0_3] : memref<1x32x256xbf16, #tpu.memory_space<vmem>>, vector<1x32x256xbf16>
    %2 = vector.shape_cast %1 : vector<1x32x256xbf16> to vector<32x256xbf16>
    %cst = arith.constant dense<0.000000e+00> : vector<16x256xf32>
    %3 = tpu.matmul %0, %2, %cst {dimension_numbers = #tpu.dot_dimension_numbers<[1], [0], [0], [1], [0, 0, 1, 1], [], []>} : vector<16x32xbf16>, vector<32x256xbf16>, vector<16x256xf32> -> vector<16x256xf32>
    %c0_4 = arith.constant 0 : index
    %c0_5 = arith.constant 0 : index
    %c0_6 = arith.constant 0 : index
    %4 = vector.load %arg5[%c0_4, %c0_5, %c0_6] : memref<1x16x256xf32, #tpu.memory_space<vmem>>, vector<1x16x256xf32>
    %5 = vector.shape_cast %4 : vector<1x16x256xf32> to vector<16x256xf32>
    %6 = vector.shape_cast %3 : vector<16x256xf32> to vector<1x16x256xf32>
    tpu.vector_store %arg5[%c0_4, %c0_5, %c0_6], %6 {strides = array<i32>} : memref<1x16x256xf32, #tpu.memory_space<vmem>>, vector<1x16x256xf32>,
    return
  }
  func.func @transform_0(%arg0: i32, %arg1: i32, %arg2: i32) -> (i32, i32) {
    %c0_i32 = arith.constant 0 : i32
    %c0_i32_0 = arith.constant 0 : i32
    return %arg1, %c0_i32 : i32, i32
  }
  func.func @transform_1(%arg0: i32, %arg1: i32, %arg2: i32) -> (i32, i32, i32) {
    %c0_i32 = arith.constant 0 : i32
    %c0_i32_0 = arith.constant 0 : i32
    return %arg0, %c0_i32, %arg2 : i32, i32, i32
  }
  func.func @transform_2(%arg0: i32, %arg1: i32, %arg2: i32) -> (i32, i32, i32) {
    %c0_i32 = arith.constant 0 : i32
    return %arg0, %arg1, %arg2 : i32, i32, i32
  }
}

</mosaic_0001>

<llo_original>
// kernel: tpu_custom_call.1
$region0: #{tpu_custom_call.1}
  #allocation0 [shape = 'u32[]', space=smem, size = 0x4, offset = 0x4, fixed_abs, tag = 'smem constant byte address 0x4 - core index']
  #allocation1 [shape = 'u32[144,128]{1,0:T(1,128)}', space=vmem, size = 0x12000, scoped, tag = 'internal scratch']
  %s0 = inlined_call_operand.hbm [shape: bf16[16,32], index: 0, kind: input, shape index: {}]
  %s1 = inlined_call_operand.hbm [shape: bf16[3,32,256], index: 1, kind: input, shape index: {}]
  %s2 = inlined_call_operand.hbm [shape: f32[3,16,256], index: 2, kind: output, shape index: {}]
  %s3 = sld [smem:[#allocation0]]
  $region49: #{tpu_custom_call.1} parent=0
    _
  %s5 = ssub.s32 1, %s3
  %s6 = scalar_select 0, %s5, %s3
  $region1: #{tpu_custom_call.1} parent=0
    #allocation2 [shape = 'u8[4096]{0}', space=vmem, size = 0x1000, scoped, tag = 'input window, operand 0, single buffered']
    #allocation3 [shape = 's32[2]{0}', space=sflag, size = 0x8, scoped, tag = 'scoped memory for tpu_custom_call.1']
    #allocation4 [shape = 's32[2]{0}', space=sflag, size = 0x8, scoped, tag = 'scoped memory for tpu_custom_call.1']
    #allocation5 [shape = 'u8[32768]{0}', space=vmem, size = 0x8000, scoped, tag = 'input window, operand 1']
    #allocation6 [shape = 's32[2]{0}', space=sflag, size = 0x8, scoped, tag = 'scoped memory for tpu_custom_call.1']
    #allocation7 [shape = 'u8[32768]{0}', space=vmem, size = 0x8000, scoped, tag = 'output window, operand 0']
    %7 = vsyncpa [#allocation3], 0
    %8 = vsyncpa [#allocation6], 0
    %s9 = scalar_lea.sflag [#allocation6], 1
    %10 = vsyncpa %s9, 0
    %11 = vsyncpa [#allocation4], 0
    %s12 = scalar_lea.sflag [#allocation4], 1
    %13 = vsyncpa %s12, 0
    loop: start=0, step=1, limit=5
    $region2: #{tpu_custom_call.1} parent=1 // loop_pre_header
      _
    $region3: #{tpu_custom_call.1} parent=1 // loop_header
      %s15 = sphi 0, %s19
      %p16 = scmp.ge.s32.totalorder %s15, 5
      %s22 = sphi 0, %s41
      %s23 = sphi 0, %s37
      %s24 = sphi 0, %s33
      %s25 = sphi 0, %s22
      %s26 = sphi 0, %s23
      %s27 = sphi 0, %s24
      %s28 = sphi 0, %s25
      %s29 = sphi 0, %s26
      %s30 = sphi 0, %s27
      %s44 = sphi 0, %s46
      %s47 = sphi 0, %s44
      %s48 = sphi 0, %s47
      %s64 = sphi 0, %s48
      %s72 = sphi 0, %s74
      %s75 = sphi 0, %s72
      %s76 = sphi 0, %s75
      %s92 = sphi 0, %s76
      %s102 = sphi 0, %s104
      %s105 = sphi 0, %s102
      %s106 = sphi 0, %s105
      %s122 = sphi 0, %s106
    $region4: #{tpu_custom_call.1} parent=1 // loop_header_branch
      %18 = sbr.rel (%p16) target = $region8
    $region5: #{tpu_custom_call.1} parent=1 // loop_body
      %s20 = ssub.s32 %s15, 1
      %s21 = ssub.s32 %s15, 2
      %s31 = sadd.s32 1, %s24
      %p32 = scmp.ge.s32.totalorder %s31, 1
      %s33 = scalar_select %p32, 0, %s31
      %s34 = sadd.s32 1, %s23
      %s35 = scalar_select %p32, %s34, %s23
      %p36 = scmp.ge.s32.totalorder %s35, 1
      %s37 = scalar_select %p36, 0, %s35
      %s38 = sadd.s32 1, %s22
      %s39 = scalar_select %p36, %s38, %s22
      %p40 = scmp.ge.s32.totalorder %s39, 3
      %s41 = scalar_select %p40, 0, %s39
      %s42 = ssub.s32 %s23, %s37
      %p43 = scmp.eq.s32.totalorder %s42, 0
      %s45 = sadd.s32 %s44, 1
      %s46 = scalar_select %p43, %s44, %s45
      %p49 = pneg %p43
      %p50 = scmp.eq.s32.totalorder %s15, 2
      %p51 = por %p49, %p50
      %p52 = scmp.ne.s32.totalorder %s44, %s47
      %p53 = scmp.eq.s32.totalorder %s15, 0
      %p54 = por %p52, %p53
      %p55 = scmp.ne.s32.totalorder %s44, %s47
      %p56 = scmp.eq.s32.totalorder %s20, 2
      %p57 = por %p55, %p56
      %p58 = scmp.ne.s32.totalorder %s47, %s48
      %p59 = scmp.eq.s32.totalorder %s20, 0
      %p60 = por %p58, %p59
      %p61 = scmp.ne.s32.totalorder %s47, %s48
      %p62 = scmp.eq.s32.totalorder %s21, 2
      %p63 = por %p61, %p62
      %p65 = scmp.ne.s32.totalorder %s48, %s64
      %p66 = scmp.eq.s32.totalorder %s21, 0
      %p67 = por %p65, %p66
      %s68 = ssub.s32 %s22, %s41
      %s69 = ssub.s32 %s24, %s33
      %s70 = sor.u32 %s68, %s69
      %p71 = scmp.eq.s32.totalorder %s70, 0
      %s73 = sadd.s32 %s72, 1
      %s74 = scalar_select %p71, %s72, %s73
      %p77 = pneg %p71
      %p78 = scmp.eq.s32.totalorder %s15, 2
      %p79 = por %p77, %p78
      %p80 = scmp.ne.s32.totalorder %s72, %s75
      %p81 = scmp.eq.s32.totalorder %s15, 0
      %p82 = por %p80, %p81
      %p83 = scmp.ne.s32.totalorder %s72, %s75
      %p84 = scmp.eq.s32.totalorder %s20, 2
      %p85 = por %p83, %p84
      %p86 = scmp.ne.s32.totalorder %s75, %s76
      %p87 = scmp.eq.s32.totalorder %s20, 0
      %p88 = por %p86, %p87
      %p89 = scmp.ne.s32.totalorder %s75, %s76
      %p90 = scmp.eq.s32.totalorder %s21, 2
      %p91 = por %p89, %p90
      %p93 = scmp.ne.s32.totalorder %s76, %s92
      %p94 = scmp.eq.s32.totalorder %s21, 0
      %p95 = por %p93, %p94
      %s96 = ssub.s32 %s22, %s41
      %s97 = ssub.s32 %s23, %s37
      %s98 = sor.u32 %s96, %s97
      %s99 = ssub.s32 %s24, %s33
      %s100 = sor.u32 %s98, %s99
      %p101 = scmp.eq.s32.totalorder %s100, 0
      %s103 = sadd.s32 %s102, 1
      %s104 = scalar_select %p101, %s102, %s103
      %p107 = pneg %p101
      %p108 = scmp.eq.s32.totalorder %s15, 2
      %p109 = por %p107, %p108
      %p110 = scmp.ne.s32.totalorder %s102, %s105
      %p111 = scmp.eq.s32.totalorder %s15, 0
      %p112 = por %p110, %p111
      %p113 = scmp.ne.s32.totalorder %s102, %s105
      %p114 = scmp.eq.s32.totalorder %s20, 2
      %p115 = por %p113, %p114
      %p116 = scmp.ne.s32.totalorder %s105, %s106
      %p117 = scmp.eq.s32.totalorder %s20, 0
      %p118 = por %p116, %p117
      %p119 = scmp.ne.s32.totalorder %s105, %s106
      %p120 = scmp.eq.s32.totalorder %s21, 2
      %p121 = por %p119, %p120
      %p123 = scmp.ne.s32.totalorder %s106, %s122
      %p124 = scmp.eq.s32.totalorder %s21, 0
      %p125 = por %p123, %p124
      %p126 = scmp.le.s32.totalorder 1, %s15
      %p127 = scmp.lt.s32.totalorder %s15, 4
      %p128 = pnand %p126, %p127
      %p129 = pneg %p128
      // Predicated region
      $region9: #{tpu_custom_call.1} parent=5 // pred_check
        _
      $region10: #{tpu_custom_call.1} parent=5 // pred_check_branch
        %131 = sbr.rel (%p128) target = $region12
      $region11: #{tpu_custom_call.1} parent=5 // pred_region
        %s132 = ssub.s32 %s15, 1
        // Predicated region
        $region13: #{tpu_custom_call.1} parent=11 // pred_check
          %p133 = pneg %p60
        $region14: #{tpu_custom_call.1} parent=11 // pred_check_branch
          %135 = sbr.rel (%p133) target = $region16
        $region15: #{tpu_custom_call.1} parent=11 // pred_region
          %s136 = smul.u32 2, %s26
          %s138 = ssub.s32 128, 128
          %139 = vsyncadd [#allocation3], %s138
          %s140 = smul.addr %s136, 64
          %s141 = scalar_lea.hbm %s0, %s140
          %s142 = sshll.u32 [#allocation2], 4
          %s143 = int_to_ptr.vmem [resolvable:$true] %s142
          %148 = dma.hbm_to_vmem [thread:$0]  %s141, 128, %s143, [#allocation3], 64, 64, 4
        $region16: #{tpu_custom_call.1} parent=11 // pred_fallthru
          _
      $region12: #{tpu_custom_call.1} parent=5 // pred_fallthru
        _
      %p149 = scmp.lt.s32.totalorder %s15, 3
      // Predicated region
      $region17: #{tpu_custom_call.1} parent=5 // pred_check
        %p150 = pneg %p149
      $region18: #{tpu_custom_call.1} parent=5 // pred_check_branch
        %152 = sbr.rel (%p150) target = $region20
      $region19: #{tpu_custom_call.1} parent=5 // pred_region
        // Predicated region
        $region21: #{tpu_custom_call.1} parent=19 // pred_check
          %p153 = pneg %p82
        $region22: #{tpu_custom_call.1} parent=19 // pred_check_branch
          %155 = sbr.rel (%p153) target = $region24
        $region23: #{tpu_custom_call.1} parent=19 // pred_region
          %s156 = sand.u32 %s72, 1
          %s157 = scalar_lea.sflag [#allocation6], %s156
          %s158 = sand.u32 %s72, 1
          %s159 = smul.addr %s158, 32
          %s160 = scalar_lea.vmem [#allocation5], %s159
          %s161 = smul.u32 2, %s24
          %s163 = ssub.s32 512, 512
          %164 = vsyncadd %s157, %s163
          %s165 = smul.addr %s22, 8
          %s166 = sadd.s32 %s161, %s165
          %s167 = smul.addr %s166, 64
          %s168 = scalar_lea.hbm %s1, %s167
          %s169 = sshll.u32 %s160, 4
          %s170 = int_to_ptr.vmem [resolvable:$true] %s169
          %175 = dma.hbm_to_vmem [thread:$0]  %s168, 512, %s170, %s157, 128, 128, 8
        $region24: #{tpu_custom_call.1} parent=19 // pred_fallthru
          _
      $region20: #{tpu_custom_call.1} parent=5 // pred_fallthru
        _
      %p176 = scmp.le.s32.totalorder 1, %s15
      %p177 = scmp.lt.s32.totalorder %s15, 4
      %p178 = pnand %p176, %p177
      %p179 = pneg %p178
      // Predicated region
      $region25: #{tpu_custom_call.1} parent=5 // pred_check
        _
      $region26: #{tpu_custom_call.1} parent=5 // pred_check_branch
        %181 = sbr.rel (%p178) target = $region28
      $region27: #{tpu_custom_call.1} parent=5 // pred_region
        %s182 = ssub.s32 %s15, 1
        // Predicated region
        $region29: #{tpu_custom_call.1} parent=27 // pred_check
          %p183 = pneg %p60
        $region30: #{tpu_custom_call.1} parent=27 // pred_check_branch
          %185 = sbr.rel (%p183) target = $region32
        $region31: #{tpu_custom_call.1} parent=27 // pred_region
          %186 = dma.done [#allocation3], 128
        $region32: #{tpu_custom_call.1} parent=27 // pred_fallthru
          _
        %s187 = sand.u32 %s75, 1
        %s188 = scalar_lea.sflag [#allocation6], %s187
        %s189 = sand.u32 %s75, 1
        %s190 = smul.addr %s189, 32
        %s191 = scalar_lea.vmem [#allocation5], %s190
        // Predicated region
        $region33: #{tpu_custom_call.1} parent=27 // pred_check
          %p192 = pneg %p88
        $region34: #{tpu_custom_call.1} parent=27 // pred_check_branch
          %194 = sbr.rel (%p192) target = $region36
        $region35: #{tpu_custom_call.1} parent=27 // pred_region
          %195 = dma.done %s188, 512
        $region36: #{tpu_custom_call.1} parent=27 // pred_fallthru
          _
        %p196 = pneg %p60
        %p197 = pneg %p57
        %s198 = sand.u32 %s75, 1
        %s199 = scalar_lea.sflag [#allocation6], %s198
        %s200 = sand.u32 %s75, 1
        %s201 = smul.addr %s200, 32
        %s202 = scalar_lea.vmem [#allocation5], %s201
        %p203 = pneg %p88
        %p204 = pneg %p85
        %p205 = pneg %p118
        %p206 = pneg %p115
        %s207 = sand.u32 %s105, 1
        %s208 = scalar_lea.sflag [#allocation4], %s207
        %s209 = sand.u32 %s105, 1
        %s210 = smul.addr %s209, 32
        %s211 = scalar_lea.vmem [#allocation7], %s210
        %s212 = smul.u32 2, %s26
        %s213 = smul.u32 2, %s27
        %s214 = smul.u32 2, %s26
        %s215 = smul.u32 2, %s27
        %v217 = vld [vmem:[#allocation2] sm:$0xf]
        %v218 = vld [vmem:[#allocation2 + $0x4] sm:$0xf]
        %v219 = vld [vmem:[%s191] sm:$0xff]
        %v220 = vld [vmem:[%s191 + $0x8] sm:$0xff]
        %v221 = vld [vmem:[%s191 + $0x10] sm:$0xff]
        %v222 = vld [vmem:[%s191 + $0x18] sm:$0xff]
        %v225 = vunpack.c.l.b16 %v217
        %v226 = vunpack.c.l.b16 %v218
        %v227 = vpack.c.b16 %v226, %v225
        %v232 = vunpack.c.l.b16 %v219
        %v233 = vunpack.c.h.b16 %v219
        %v234 = vunpack.c.l.b16 %v220
        %v235 = vunpack.c.h.b16 %v220
        %v236 = vunpack.c.l.b16 %v221
        %v237 = vunpack.c.h.b16 %v221
        %v238 = vunpack.c.l.b16 %v222
        %v239 = vunpack.c.h.b16 %v222
        %v240 = vpack.c.b16 %v234, %v232
        %v241 = vpack.c.b16 %v235, %v233
        %v242 = vpack.c.b16 %v238, %v236
        %v243 = vpack.c.b16 %v239, %v237
        %vm248 = vcmask 261120
        %v250 = vsel %vm248, %v227, 0
        %252 = vmatprep.subr.bf16.mxu0 %v241
        %253 = vmatpush1.bf16.msra.mxu0 %v240
        %254 = vmatprep.subr.bf16.mxu0 %v243
        %255 = vmatpush1.bf16.msra.mxu0 %v242
        %256 = vmatprep.subr.bf16.mxu0 0
        %257 = vmatpush1.bf16.msra.mxu0 0
        %258 = vmatprep.subr.bf16.mxu0 0
        %259 = vmatpush1.bf16.msra.mxu0 0
        %260 = vmatprep.subr.bf16.mxu0 0
        %261 = vmatpush1.bf16.msra.mxu0 0
        %262 = vmatprep.subr.bf16.mxu0 0
        %263 = vmatpush1.bf16.msra.mxu0 0
        %264 = vmatprep.subr.bf16.mxu0 0
        %265 = vmatpush1.bf16.msra.mxu0 0
        %266 = vmatprep.subr.bf16.mxu0 0
        %267 = vmatpush1.bf16.msra.mxu0 0
        %268 = vmatprep.subr.bf16.mxu0 0
        %269 = vmatpush1.bf16.msra.mxu0 0
        %270 = vmatprep.subr.bf16.mxu0 0
        %271 = vmatpush1.bf16.msra.mxu0 0
        %272 = vmatprep.subr.bf16.mxu0 0
        %273 = vmatpush1.bf16.msra.mxu0 0
        %274 = vmatprep.subr.bf16.mxu0 0
        %275 = vmatpush1.bf16.msra.mxu0 0
        %276 = vmatprep.subr.bf16.mxu0 0
        %277 = vmatpush1.bf16.msra.mxu0 0
        %278 = vmatprep.subr.bf16.mxu0 0
        %279 = vmatpush1.bf16.msra.mxu0 0
        %280 = vmatprep.subr.bf16.mxu0 0
        %281 = vmatpush1.bf16.msra.mxu0 0
        %282 = vmatprep.subr.bf16.mxu0 0
        %283 = vmatpush1.bf16.msra.mxu0 0
        %284 = vmatprep.mubr.bf16.mxu0 0
        %285 = vmatmul.mubr.bf16.gmra.mrb[0].mxu0 %v250
        %v286 = vpop.f32.mrb[0].mxu0
        %v287 = vadd.f32 0.0, %v286
        %v288 = vpop.f32.mrb[0].mxu0
        %v289 = vadd.f32 0.0, %v288
        %v290 = vpop.f32.mrb[0].mxu0
        %v291 = vadd.f32 0.0, %v290
        %v292 = vpop.f32.mrb[0].mxu0
        %v293 = vadd.f32 0.0, %v292
        %294 = vdwg.mxu0
        %295 = vst [vmem:[%s211] sm:$0xff] %v287
        %296 = vst [vmem:[%s211 + $0x8] sm:$0xff] %v289
        %297 = vst [vmem:[%s211 + $0x10] sm:$0xff] %v291
        %298 = vst [vmem:[%s211 + $0x18] sm:$0xff] %v293
        %s299 = sand.u32 %s105, 1
        %s300 = scalar_lea.sflag [#allocation4], %s299
        %s301 = sand.u32 %s105, 1
        %s302 = smul.addr %s301, 32
        %s303 = scalar_lea.vmem [#allocation7], %s302
        // Predicated region
        $region37: #{tpu_custom_call.1} parent=27 // pred_check
          %p304 = pneg %p115
        $region38: #{tpu_custom_call.1} parent=27 // pred_check_branch
          %306 = sbr.rel (%p304) target = $region40
        $region39: #{tpu_custom_call.1} parent=27 // pred_region
          %s307 = smul.u32 2, %s26
          %s308 = smul.u32 2, %s27
          %s310 = ssub.s32 512, 512
          %311 = vsyncadd %s300, %s310
          %s312 = smul.addr %s307, 2
          %s313 = sadd.s32 %s308, %s312
          %s314 = smul.addr %s25, 4
          %s315 = sadd.s32 %s313, %s314
          %s316 = smul.addr %s315, 128
          %s317 = scalar_lea.hbm %s2, %s316
          %s318 = sshll.u32 %s303, 4
          %s319 = int_to_ptr.vmem [resolvable:$true] %s318
          %324 = dma.vmem_to_hbm [thread:$0]  %s319, 512, %s317, %s300, 256, 256, 16
        $region40: #{tpu_custom_call.1} parent=27 // pred_fallthru
          _
      $region28: #{tpu_custom_call.1} parent=5 // pred_fallthru
        _
      %p325 = scmp.le.s32.totalorder 2, %s15
      // Predicated region
      $region41: #{tpu_custom_call.1} parent=5 // pred_check
        %p326 = pneg %p325
      $region42: #{tpu_custom_call.1} parent=5 // pred_check_branch
        %328 = sbr.rel (%p326) target = $region44
      $region43: #{tpu_custom_call.1} parent=5 // pred_region
        %s329 = ssub.s32 %s15, 2
        // Predicated region
        $region45: #{tpu_custom_call.1} parent=43 // pred_check
          %p330 = pneg %p121
        $region46: #{tpu_custom_call.1} parent=43 // pred_check_branch
          %332 = sbr.rel (%p330) target = $region48
        $region47: #{tpu_custom_call.1} parent=43 // pred_region
          %s333 = sand.u32 %s106, 1
          %s334 = scalar_lea.sflag [#allocation4], %s333
          %s335 = sand.u32 %s106, 1
          %s336 = smul.addr %s335, 32
          %s337 = scalar_lea.vmem [#allocation7], %s336
          %338 = dma.done %s334, 512
        $region48: #{tpu_custom_call.1} parent=43 // pred_fallthru
          _
      $region44: #{tpu_custom_call.1} parent=5 // pred_fallthru
        _
    $region6: #{tpu_custom_call.1} parent=1 // loop_footer
      %s19 = sadd.s32 1, %s15
    $region7: #{tpu_custom_call.1} parent=1 // loop_footer_branch
      %14 = sbr.rel target = $region3
    $region8: #{tpu_custom_call.1} parent=1 // loop_exit
      _
    %339 = vsyncpa [#allocation3], 1
    %s340 = scalar_lea.sflag [#allocation3], 1
    %341 = vsyncpa %s340, 1
    %342 = vsyncpa [#allocation6], 1
    %s343 = scalar_lea.sflag [#allocation6], 1
    %344 = vsyncpa %s343, 1
    %345 = vsyncpa [#allocation4], 1
    %s346 = scalar_lea.sflag [#allocation4], 1
    %347 = vsyncpa %s346, 1

</llo_original>
